<compile_context>
chip_gen: v7x
topology: tpu7x:2x2x1
jax: 0.10.0
libtpu: 0.0.40
codegen_flags: <defaults>
</compile_context>

<pallas_src>
import functools

import jax
import jax.numpy as jnp
from jax.experimental import pallas as pl
from jax.experimental.pallas import tpu as pltpu


def _round_up(x, m):
    return ((x + m - 1) // m) * m


def _ce_label_smooth_kernel(logits_ref, labels_ref, out_ref, *,
                            epsilon, num_classes, lane_major_out):
    """One batch tile: per-row label-smoothed cross entropy."""
    x = logits_ref[...]                      # (TB, C) in the input dtype (bf16 stays packed)
    labels = labels_ref[...]                 # (TB, 1) int32

    # Row max in the input dtype: exact for bf16/f32, halves VALU work on v6e/v7x.
    mf = jnp.max(x, axis=1, keepdims=True).astype(jnp.float32)      # (TB, 1)

    # exp / accumulations in f32. (x - max) is recomputed at each consumer so
    # only the (possibly bf16) input block has to stay live in VMEM.
    sum_exp = jnp.sum(jnp.exp(x.astype(jnp.float32) - mf), axis=1, keepdims=True)
    lse = jnp.log(sum_exp)                                          # (TB, 1)

    # Fused weighted reduction: smoothed_c = (1-eps)*[c==y] + eps/C sums to 1, so
    #   loss = sum_c smoothed_c * (lse - (x_c - max)) = lse - sum_c smoothed_c*(x_c - max)
    c = jnp.float32(num_classes)
    eps = jnp.float32(epsilon)
    class_ids = jax.lax.broadcasted_iota(jnp.int32, x.shape, 1)     # (TB, C) int32
    w = jnp.where(class_ids == labels, 1.0 - eps + eps / c, eps / c)  # f32 weights
    wsum = jnp.sum(w * (x.astype(jnp.float32) - mf), axis=1, keepdims=True)

    per = lse - wsum                                                # (TB, 1) f32
    if lane_major_out:
        # Lane-dense store: per-row losses transposed onto the 128-lane axis
        # (XLU transpose rides an otherwise idle slot; avoids width-1 vst.msk).
        out_ref[...] = jnp.transpose(per).reshape(out_ref.shape)    # (1, 1, TB)
    else:
        out_ref[...] = per                                          # (TB, 1) column


def _build_call(C, tb, grid, epsilon, num_classes, lane_major, vmem_limit_bytes):
    kernel = functools.partial(
        _ce_label_smooth_kernel, epsilon=float(epsilon),
        num_classes=int(num_classes), lane_major_out=lane_major)
    if lane_major:
        out_shape = jax.ShapeDtypeStruct((grid, 1, tb), jnp.float32)
        out_spec = pl.BlockSpec((1, 1, tb), lambda i: (i, 0, 0))
    else:
        out_shape = jax.ShapeDtypeStruct((grid * tb, 1), jnp.float32)
        out_spec = pl.BlockSpec((tb, 1), lambda i: (i, 0))
    return pl.pallas_call(
        kernel,
        out_shape=out_shape,
        grid=(grid,),
        in_specs=[
            pl.BlockSpec((tb, C), lambda i: (i, 0)),     # logits batch tile
            pl.BlockSpec((tb, 1), lambda i: (i, 0)),     # labels batch tile
        ],
        out_specs=out_spec,
        compiler_params=pltpu.CompilerParams(
            dimension_semantics=("parallel",),           # megacore-shardable batch axis
            vmem_limit_bytes=int(vmem_limit_bytes),
        ),
    )


def cross_entropy_label_smooth(logits, targets, *, num_classes, epsilon=0.1,
                               reduction=True, tile_batch=None,
                               vmem_limit_bytes=48 * 1024 * 1024,
                               tile_vmem_budget=24 * 1024 * 1024):
    """Pallas-backed equivalent of CrossEntropyLabelSmooth.forward.

    logits:  (B, num_classes) float array (pre-softmax scores, f32 or bf16)
    targets: (B,) integer class labels
    """
    B, C = logits.shape
    assert C == num_classes
    labels2d = targets.reshape(B, 1).astype(jnp.int32)

    # Only tiny batches (< one sublane tile) get padded; ragged batches are
    # handled by the grid's partial last tile -- no full-array HBM pad copy.
    if B < 8:
        logits = jnp.pad(logits, ((0, 8 - B), (0, 0)))
        labels2d = jnp.pad(labels2d, ((0, 8 - B), (0, 0)))
    B_arr = logits.shape[0]

    in_bytes = jnp.dtype(logits.dtype).itemsize
    if tile_batch is None:
        # VMEM budget per grid step: double-buffered input tile plus ~16 B/elem
        # of in-kernel f32 temporaries (shifted / weights / iota / exp).
        per_row = C * (2 * in_bytes + 16) + 32
        tb = max(8, min(1024, (tile_vmem_budget // per_row) // 8 * 8))
    else:
        tb = max(8, int(tile_batch) // 8 * 8)
    tb = min(tb, max(8, (B_arr // 8) * 8))       # block must not exceed the array
    if tb >= 128:
        tb = (tb // 128) * 128                   # lane-width-friendly large tiles
    if B_arr >= 16 and pl.cdiv(B_arr, tb) < 2:
        # Ensure >= 2 "parallel" tiles so v7x can feed both TensorCores.
        tb = _round_up(pl.cdiv(B_arr, 2), 8)
    grid = pl.cdiv(B_arr, tb)                    # ragged last tile: row-local math only

    try:
        out = _build_call(C, tb, grid, epsilon, num_classes,
                          lane_major=True,
                          vmem_limit_bytes=vmem_limit_bytes)(logits, labels2d)
    except Exception:
        # Fallback to the proven (TB, 1) column store if this Mosaic version
        # cannot relayout the small (TB, 1) -> (1, TB) transpose.
        out = _build_call(C, tb, grid, epsilon, num_classes,
                          lane_major=False,
                          vmem_limit_bytes=vmem_limit_bytes)(logits, labels2d)

    per_sample = out.reshape(-1)[:B]             # drop ragged-tile garbage rows
    if reduction:
        # Mean over B floats: negligible, keeps the grid embarrassingly parallel.
        return jnp.mean(per_sample)
    return per_sample


def _reference(logits, targets, num_classes, epsilon=0.1, reduction=True):
    log_probs = jax.nn.log_softmax(logits.astype(jnp.float32), axis=1)
    onehot = jax.nn.one_hot(targets, num_classes, dtype=jnp.float32)
    smoothed = (1.0 - epsilon) * onehot + epsilon / num_classes
    loss = jnp.sum(-smoothed * log_probs, axis=1)
    return jnp.mean(loss) if reduction else loss


if __name__ == "__main__":
    key = jax.random.PRNGKey(0)
    keys = jax.random.split(key, 8)

    # 1) Small shape consistent with the module: (batch, num_classes).
    B1, C1 = 8, 32
    logits1 = jax.random.normal(keys[0], (B1, C1), dtype=jnp.float32)
    targets1 = jax.random.randint(keys[1], (B1,), 0, C1, dtype=jnp.int32)
    loss1 = cross_entropy_label_smooth(logits1, targets1, num_classes=C1)
    jax.block_until_ready(loss1)
    ref1 = _reference(logits1, targets1, C1)
    assert jnp.allclose(loss1, ref1, atol=1e-5, rtol=1e-5), (loss1, ref1)

    per1 = cross_entropy_label_smooth(logits1, targets1, num_classes=C1,
                                      reduction=False)
    jax.block_until_ready(per1)
    per1_ref = _reference(logits1, targets1, C1, reduction=False)
    assert jnp.allclose(per1, per1_ref, atol=1e-5, rtol=1e-5)

    # 2) Ragged batch + multi-tile grid (no padded copy of the logits).
    B2, C2 = 12, 32
    logits2 = jax.random.normal(keys[2], (B2, C2), dtype=jnp.float32)
    targets2 = jax.random.randint(keys[3], (B2,), 0, C2, dtype=jnp.int32)
    loss2 = cross_entropy_label_smooth(logits2, targets2, num_classes=C2,
                                       tile_batch=8)
    jax.block_until_ready(loss2)
    ref2 = _reference(logits2, targets2, C2)
    assert jnp.allclose(loss2, ref2, atol=1e-5, rtol=1e-5), (loss2, ref2)

    # 3) Office-31-like class count; auto tile splits into >= 2 parallel tiles.
    B3, C3 = 64, 31
    logits3 = jax.random.normal(keys[4], (B3, C3), dtype=jnp.float32)
    targets3 = jax.random.randint(keys[5], (B3,), 0, C3, dtype=jnp.int32)
    loss3 = cross_entropy_label_smooth(logits3, targets3, num_classes=C3)
    jax.block_until_ready(loss3)
    ref3 = _reference(logits3, targets3, C3)
    assert jnp.allclose(loss3, ref3, atol=1e-5, rtol=1e-5), (loss3, ref3)

    # 4) bf16 logits: bf16 HBM traffic, bf16-exact max/compare, f32 accumulation.
    B4, C4 = 16, 40
    logits4 = jax.random.normal(keys[6], (B4, C4),
                                dtype=jnp.float32).astype(jnp.bfloat16)
    targets4 = jax.random.randint(keys[7], (B4,), 0, C4, dtype=jnp.int32)
    loss4 = cross_entropy_label_smooth(logits4, targets4, num_classes=C4)
    jax.block_until_ready(loss4)
    ref4 = _reference(logits4, targets4, C4)
    assert jnp.allclose(loss4, ref4, atol=1e-5, rtol=1e-5), (loss4, ref4)

    print("KERNEL_OK")
</pallas_src>

<mosaic_0001>
module attributes {stable_mosaic.version = 11 : i64} {
  func.func @_ce_label_smooth_kernel(%arg0: i32, %arg1: memref<8x32xf32, #tpu.memory_space<vmem>>, %arg2: memref<8x1xi32, #tpu.memory_space<vmem>>, %arg3: memref<1x1x8xf32, #tpu.memory_space<vmem>>) attributes {dimension_semantics = [#tpu.dimension_semantics<parallel>], iteration_bounds = array<i64: 1>, scalar_prefetch = 0 : i64, scratch_operands = 0 : i64, tpu.core_type = #tpu.core_type<tc>, window_params = [{transform_indices = @transform_0, window_bounds = array<i64: 8, 32>}, {transform_indices = @transform_1, window_bounds = array<i64: 8, 1>}, {transform_indices = @transform_2, window_bounds = array<i64: 1, 1, 8>}]} {
    %c0 = arith.constant 0 : index
    %c0_0 = arith.constant 0 : index
    %0 = vector.load %arg1[%c0, %c0_0] : memref<8x32xf32, #tpu.memory_space<vmem>>, vector<8x32xf32>
    %c0_1 = arith.constant 0 : index
    %c0_2 = arith.constant 0 : index
    %1 = vector.load %arg2[%c0_1, %c0_2] : memref<8x1xi32, #tpu.memory_space<vmem>>, vector<8x1xi32>
    %cst = arith.constant dense<0xFF800000> : vector<8xf32>
    %2 = vector.multi_reduction <maximumf>, %0, %cst [1] : vector<8x32xf32> to vector<8xf32>
    %3 = vector.shape_cast %2 : vector<8xf32> to vector<8x1xf32>
    %4 = vector.broadcast %3 : vector<8x1xf32> to vector<8x32xf32>
    %5 = arith.subf %0, %4 : vector<8x32xf32>
    %6 = math.exp %5 : vector<8x32xf32>
    %cst_3 = arith.constant dense<0.000000e+00> : vector<8xf32>
    %7 = vector.multi_reduction <add>, %6, %cst_3 [1] : vector<8x32xf32> to vector<8xf32>
    %8 = vector.shape_cast %7 : vector<8xf32> to vector<8x1xf32>
    %9 = math.log %8 : vector<8x1xf32>
    %10 = tpu.iota {dimensions = array<i32: 1>} : vector<8x32xi32>
    %11 = vector.broadcast %1 : vector<8x1xi32> to vector<8x32xi32>
    %12 = arith.cmpi eq, %10, %11 : vector<8x32xi32>
    %cst_4 = arith.constant 1.000000e+00 : f32
    %cst_5 = arith.constant 1.000000e-01 : f32
    %13 = arith.subf %cst_4, %cst_5 : f32
    %cst_6 = arith.constant 1.000000e-01 : f32
    %cst_7 = arith.constant 3.200000e+01 : f32
    %14 = arith.divf %cst_6, %cst_7 : f32
    %15 = arith.addf %13, %14 : f32
    %cst_8 = arith.constant 1.000000e-01 : f32
    %cst_9 = arith.constant 3.200000e+01 : f32
    %16 = arith.divf %cst_8, %cst_9 : f32
    %17 = vector.broadcast %15 : f32 to vector<8x32xf32>
    %18 = vector.broadcast %16 : f32 to vector<8x32xf32>
    %19 = arith.select %12, %17, %18 : vector<8x32xi1>, vector<8x32xf32>
    %20 = vector.broadcast %3 : vector<8x1xf32> to vector<8x32xf32>
    %21 = arith.subf %0, %20 : vector<8x32xf32>
    %22 = arith.mulf %19, %21 : vector<8x32xf32>
    %cst_10 = arith.constant dense<0.000000e+00> : vector<8xf32>
    %23 = vector.multi_reduction <add>, %22, %cst_10 [1] : vector<8x32xf32> to vector<8xf32>
    %24 = vector.shape_cast %23 : vector<8xf32> to vector<8x1xf32>
    %25 = arith.subf %9, %24 : vector<8x1xf32>
    %26 = tpu.transpose %25, [1, 0] : vector<8x1xf32> -> vector<1x8xf32>
    %27 = vector.shape_cast %26 : vector<1x8xf32> to vector<1x1x8xf32>
    %c0_11 = arith.constant 0 : index
    %c0_12 = arith.constant 0 : index
    %c0_13 = arith.constant 0 : index
    %28 = vector.load %arg3[%c0_11, %c0_12, %c0_13] : memref<1x1x8xf32, #tpu.memory_space<vmem>>, vector<1x1x8xf32>
    tpu.vector_store %arg3[%c0_11, %c0_12, %c0_13], %27 {strides = array<i32>} : memref<1x1x8xf32, #tpu.memory_space<vmem>>, vector<1x1x8xf32>,
    return
  }
  func.func @transform_0(%arg0: i32) -> (i32, i32) {
    %c0_i32 = arith.constant 0 : i32
    %c0_i32_0 = arith.constant 0 : i32
    return %arg0, %c0_i32 : i32, i32
  }
  func.func @transform_1(%arg0: i32) -> (i32, i32) {
    %c0_i32 = arith.constant 0 : i32
    %c0_i32_0 = arith.constant 0 : i32
    return %arg0, %c0_i32 : i32, i32
  }
  func.func @transform_2(%arg0: i32) -> (i32, i32, i32) {
    %c0_i32 = arith.constant 0 : i32
    %c0_i32_0 = arith.constant 0 : i32
    %c0_i32_1 = arith.constant 0 : i32
    return %arg0, %c0_i32, %c0_i32_0 : i32, i32, i32
  }
}

module attributes {stable_mosaic.version = 11 : i64} {
  func.func @_ce_label_smooth_kernel(%arg0: i32, %arg1: memref<8x32xf32, #tpu.memory_space<vmem>>, %arg2: memref<8x1xi32, #tpu.memory_space<vmem>>, %arg3: memref<8x1xf32, #tpu.memory_space<vmem>>) attributes {dimension_semantics = [#tpu.dimension_semantics<parallel>], iteration_bounds = array<i64: 1>, scalar_prefetch = 0 : i64, scratch_operands = 0 : i64, tpu.core_type = #tpu.core_type<tc>, window_params = [{transform_indices = @transform_0, window_bounds = array<i64: 8, 32>}, {transform_indices = @transform_1, window_bounds = array<i64: 8, 1>}, {transform_indices = @transform_2, window_bounds = array<i64: 8, 1>}]} {
    %c0 = arith.constant 0 : index
    %c0_0 = arith.constant 0 : index
    %0 = vector.load %arg1[%c0, %c0_0] : memref<8x32xf32, #tpu.memory_space<vmem>>, vector<8x32xf32>
    %c0_1 = arith.constant 0 : index
    %c0_2 = arith.constant 0 : index
    %1 = vector.load %arg2[%c0_1, %c0_2] : memref<8x1xi32, #tpu.memory_space<vmem>>, vector<8x1xi32>
    %cst = arith.constant dense<0xFF800000> : vector<8xf32>
    %2 = vector.multi_reduction <maximumf>, %0, %cst [1] : vector<8x32xf32> to vector<8xf32>
    %3 = vector.shape_cast %2 : vector<8xf32> to vector<8x1xf32>
    %4 = vector.broadcast %3 : vector<8x1xf32> to vector<8x32xf32>
    %5 = arith.subf %0, %4 : vector<8x32xf32>
    %6 = math.exp %5 : vector<8x32xf32>
    %cst_3 = arith.constant dense<0.000000e+00> : vector<8xf32>
    %7 = vector.multi_reduction <add>, %6, %cst_3 [1] : vector<8x32xf32> to vector<8xf32>
    %8 = vector.shape_cast %7 : vector<8xf32> to vector<8x1xf32>
    %9 = math.log %8 : vector<8x1xf32>
    %10 = tpu.iota {dimensions = array<i32: 1>} : vector<8x32xi32>
    %11 = vector.broadcast %1 : vector<8x1xi32> to vector<8x32xi32>
    %12 = arith.cmpi eq, %10, %11 : vector<8x32xi32>
    %cst_4 = arith.constant 1.000000e+00 : f32
    %cst_5 = arith.constant 1.000000e-01 : f32
    %13 = arith.subf %cst_4, %cst_5 : f32
    %cst_6 = arith.constant 1.000000e-01 : f32
    %cst_7 = arith.constant 3.200000e+01 : f32
    %14 = arith.divf %cst_6, %cst_7 : f32
    %15 = arith.addf %13, %14 : f32
    %cst_8 = arith.constant 1.000000e-01 : f32
    %cst_9 = arith.constant 3.200000e+01 : f32
    %16 = arith.divf %cst_8, %cst_9 : f32
    %17 = vector.broadcast %15 : f32 to vector<8x32xf32>
    %18 = vector.broadcast %16 : f32 to vector<8x32xf32>
    %19 = arith.select %12, %17, %18 : vector<8x32xi1>, vector<8x32xf32>
    %20 = vector.broadcast %3 : vector<8x1xf32> to vector<8x32xf32>
    %21 = arith.subf %0, %20 : vector<8x32xf32>
    %22 = arith.mulf %19, %21 : vector<8x32xf32>
    %cst_10 = arith.constant dense<0.000000e+00> : vector<8xf32>
    %23 = vector.multi_reduction <add>, %22, %cst_10 [1] : vector<8x32xf32> to vector<8xf32>
    %24 = vector.shape_cast %23 : vector<8xf32> to vector<8x1xf32>
    %25 = arith.subf %9, %24 : vector<8x1xf32>
    %c0_11 = arith.constant 0 : index
    %c0_12 = arith.constant 0 : index
    %26 = vector.load %arg3[%c0_11, %c0_12] : memref<8x1xf32, #tpu.memory_space<vmem>>, vector<8x1xf32>
    tpu.vector_store %arg3[%c0_11, %c0_12], %25 {strides = array<i32>} : memref<8x1xf32, #tpu.memory_space<vmem>>, vector<8x1xf32>,
    return
  }
  func.func @transform_0(%arg0: i32) -> (i32, i32) {
    %c0_i32 = arith.constant 0 : i32
    %c0_i32_0 = arith.constant 0 : i32
    return %arg0, %c0_i32 : i32, i32
  }
  func.func @transform_1(%arg0: i32) -> (i32, i32) {
    %c0_i32 = arith.constant 0 : i32
    %c0_i32_0 = arith.constant 0 : i32
    return %arg0, %c0_i32 : i32, i32
  }
  func.func @transform_2(%arg0: i32) -> (i32, i32) {
    %c0_i32 = arith.constant 0 : i32
    %c0_i32_0 = arith.constant 0 : i32
    return %arg0, %c0_i32 : i32, i32
  }
}

</mosaic_0001>

<llo_original>
// kernel: tpu_custom_call.1
$region0: #{tpu_custom_call.1}
  #allocation0 [shape = 'u32[]', space=smem, size = 0x4, offset = 0x4, fixed_abs, tag = 'smem constant byte address 0x4 - core index']
  #allocation1 [shape = 'u32[144,128]{1,0:T(1,128)}', space=vmem, size = 0x12000, scoped, tag = 'internal scratch']
  %s0 = inlined_call_operand.vmem [shape: f32[8,32], index: 0, kind: input, shape index: {}]
  %s1 = inlined_call_operand.vmem [shape: s32[8,1], index: 1, kind: input, shape index: {}]
  %s2 = inlined_call_operand.hbm [shape: f32[1,1,8], index: 2, kind: output, shape index: {}]
  %s3 = sld [smem:[#allocation0]]
  $region18: #{tpu_custom_call.1} parent=0
    _
  %s5 = ssub.s32 1, %s3
  %s6 = scalar_select 0, %s5, %s3
  $region1: #{tpu_custom_call.1} parent=0
    #allocation2 [shape = 'u8[512]{0}', space=vmem, size = 0x400, scoped, tag = 'output window, operand 0, single buffered']
    #allocation3 [shape = 's32[1]{0}', space=sflag, size = 0x4, scoped, tag = 'scoped memory for tpu_custom_call.1']
    %7 = vsyncpa [#allocation3], 0
    // Predicated region
    $region2: #{tpu_custom_call.1} parent=1 // pred_check
      _
    $region3: #{tpu_custom_call.1} parent=1 // pred_check_branch
      %9 = sbr.rel (0) target = $region5
    $region4: #{tpu_custom_call.1} parent=1 // pred_region
      _
    $region5: #{tpu_custom_call.1} parent=1 // pred_fallthru
      _
    // Predicated region
    $region6: #{tpu_custom_call.1} parent=1 // pred_check
      _
    $region7: #{tpu_custom_call.1} parent=1 // pred_check_branch
      %11 = sbr.rel (0) target = $region9
    $region8: #{tpu_custom_call.1} parent=1 // pred_region
      _
    $region9: #{tpu_custom_call.1} parent=1 // pred_fallthru
      _
    %v12 = vld [vmem:[%s0] sm:$0xff]
    %v13 = vld [vmem:[%s1] sm:$0xff]
    %vm14 = vcmask 261120
    %v15 = vsel %vm14, %v12, -inf
    %16 = vmax.xlane.f32.xlu0 %v15
    %v17 = vpop.xlane.xlu0 %16
    %v18 = vsub.f32 %v12, %v17
    %v19 = vmul.f32 %v18, 1.442695
    %v20 = vpow.pop %v19
    %v21 = vsel %vm14, %v20, 0.0
    %22 = vadd.xlane.f32.xlu0 %v21
    %v23 = vpop.xlane.xlu0 %22
    %v24 = vlog2.pop %v23
    %v25 = vmul.f32 %v24, 0.6931472
    %v26 = vlaneseq
    %v27 = vand.u32 %v26, 127
    %28 = vset.pattern.permute.xlu0 0
    %29 = vperm.xlu0 %28, %v13
    %v30 = vpop.permute.xlu0 %29
    %vm31 = vcmp.eq.s32.totalorder %v27, %v30
    %v32 = vsel %vm31, 0.903125, 0.003125
    %v33 = vmul.f32 %v32, %v18
    %v34 = vsel %vm14, %v33, 0.0
    %35 = vadd.xlane.f32.xlu0 %v34
    %v36 = vpop.xlane.xlu0 %35
    %v37 = vsub.f32 %v25, %v36
    %38 = vxpose.xlu0.b32.start [1/16] %v37, 128
    %39 = vxpose.xlu0.b32.cont [2/16] 0.0, 128
    %40 = vxpose.xlu0.b32.cont [3/16] 0.0, 128
    %41 = vxpose.xlu0.b32.cont [4/16] 0.0, 128
    %42 = vxpose.xlu0.b32.cont [5/16] 0.0, 128
    %43 = vxpose.xlu0.b32.cont [6/16] 0.0, 128
    %44 = vxpose.xlu0.b32.cont [7/16] 0.0, 128
    %45 = vxpose.xlu0.b32.cont [8/16] 0.0, 128
    %46 = vxpose.xlu0.b32.cont [9/16] 0.0, 128
    %47 = vxpose.xlu0.b32.cont [10/16] 0.0, 128
    %48 = vxpose.xlu0.b32.cont [11/16] 0.0, 128
    %49 = vxpose.xlu0.b32.cont [12/16] 0.0, 128
    %50 = vxpose.xlu0.b32.cont [13/16] 0.0, 128
    %51 = vxpose.xlu0.b32.cont [14/16] 0.0, 128
    %52 = vxpose.xlu0.b32.cont [15/16] 0.0, 128
    %53 = vxpose.xlu0.b32.end [16/16] 0.0, 128
    %v54 = vpop.trf.xlu0
    %v55 = vpop.trf.xlu0
    %v56 = vpop.trf.xlu0
    %v57 = vpop.trf.xlu0
    %v58 = vpop.trf.xlu0
    %v59 = vpop.trf.xlu0
    %v60 = vpop.trf.xlu0
    %v61 = vpop.trf.xlu0
    %v62 = vpop.trf.xlu0
    %v63 = vpop.trf.xlu0
    %v64 = vpop.trf.xlu0
    %v65 = vpop.trf.xlu0
    %v66 = vpop.trf.xlu0
    %v67 = vpop.trf.xlu0
    %v68 = vpop.trf.xlu0
    %v69 = vpop.trf.xlu0
    %vm70 = vcmask 57344
    %71 = vst.msk [vmem:[#allocation2] sm:$0x1] %vm70, %v54
    // Predicated region
    $region10: #{tpu_custom_call.1} parent=1 // pred_check
      _
    $region11: #{tpu_custom_call.1} parent=1 // pred_check_branch
      %73 = sbr.rel (0) target = $region13
    $region12: #{tpu_custom_call.1} parent=1 // pred_region
      %s75 = ssub.s32 16, 16
      %76 = vsyncadd [#allocation3], %s75
      %s78 = sshll.u32 [#allocation2], 4
      %s79 = int_to_ptr.vmem [resolvable:$true] %s78
      %81 = dma.vmem_to_hbm [thread:$0]  %s79, 16, %s2, [#allocation3]
    $region13: #{tpu_custom_call.1} parent=1 // pred_fallthru
      _
    // Predicated region
    $region14: #{tpu_custom_call.1} parent=1 // pred_check
      _
    $region15: #{tpu_custom_call.1} parent=1 // pred_check_branch
      %83 = sbr.rel (0) target = $region17
    $region16: #{tpu_custom_call.1} parent=1 // pred_region
      %84 = dma.done [#allocation3], 16
    $region17: #{tpu_custom_call.1} parent=1 // pred_fallthru
      _
    %85 = vsyncpa [#allocation3], 1

// kernel: tpu_custom_call.1
$region0: #{tpu_custom_call.1}
  #allocation0 [shape = 'u32[]', space=smem, size = 0x4, offset = 0x4, fixed_abs, tag = 'smem constant byte address 0x4 - core index']
  #allocation1 [shape = 'u32[144,128]{1,0:T(1,128)}', space=vmem, size = 0x12000, scoped, tag = 'internal scratch']
  %s0 = inlined_call_operand.vmem [shape: f32[8,32], index: 0, kind: input, shape index: {}]
  %s1 = inlined_call_operand.vmem [shape: s32[8,1], index: 1, kind: input, shape index: {}]
  %s2 = inlined_call_operand.vmem [shape: f32[8,1], index: 2, kind: output, shape index: {}]
  %s3 = sld [smem:[#allocation0]]
  $region18: #{tpu_custom_call.1} parent=0
    _
  %s5 = ssub.s32 1, %s3
  %s6 = scalar_select 0, %s5, %s3
  // Predicated region
  $region2: #{tpu_custom_call.1} parent=0 // pred_check
    _
  $region3: #{tpu_custom_call.1} parent=0 // pred_check_branch
    %8 = sbr.rel (0) target = $region5
  $region4: #{tpu_custom_call.1} parent=0 // pred_region
    _
  $region5: #{tpu_custom_call.1} parent=0 // pred_fallthru
    _
  // Predicated region
  $region6: #{tpu_custom_call.1} parent=0 // pred_check
    _
  $region7: #{tpu_custom_call.1} parent=0 // pred_check_branch
    %10 = sbr.rel (0) target = $region9
  $region8: #{tpu_custom_call.1} parent=0 // pred_region
    _
  $region9: #{tpu_custom_call.1} parent=0 // pred_fallthru
    _
  %v11 = vld [vmem:[%s0] sm:$0xff]
  %v12 = vld [vmem:[%s1] sm:$0xff]
  %vm13 = vcmask 261120
  %v14 = vsel %vm13, %v11, -inf
  %15 = vmax.xlane.f32.xlu0 %v14
  %v16 = vpop.xlane.xlu0 %15
  %v17 = vsub.f32 %v11, %v16
  %v18 = vmul.f32 %v17, 1.442695
  %v19 = vpow.pop %v18
  %v20 = vsel %vm13, %v19, 0.0
  %21 = vadd.xlane.f32.xlu0 %v20
  %v22 = vpop.xlane.xlu0 %21
  %v23 = vlog2.pop %v22
  %v24 = vmul.f32 %v23, 0.6931472
  %v25 = vlaneseq
  %v26 = vand.u32 %v25, 127
  %27 = vset.pattern.permute.xlu0 0
  %28 = vperm.xlu0 %27, %v12
  %v29 = vpop.permute.xlu0 %28
  %vm30 = vcmp.eq.s32.totalorder %v26, %v29
  %v31 = vsel %vm30, 0.903125, 0.003125
  %v32 = vmul.f32 %v31, %v17
  %v33 = vsel %vm13, %v32, 0.0
  %34 = vadd.xlane.f32.xlu0 %v33
  %v35 = vpop.xlane.xlu0 %34
  %v36 = vsub.f32 %v24, %v35
  %vm37 = vcmask 7168
  %38 = vst.msk [vmem:[%s2] sm:$0xff] %vm37, %v36
  // Predicated region
  $region10: #{tpu_custom_call.1} parent=0 // pred_check
    _
  $region11: #{tpu_custom_call.1} parent=0 // pred_check_branch
    %40 = sbr.rel (0) target = $region13
  $region12: #{tpu_custom_call.1} parent=0 // pred_region
    _
  $region13: #{tpu_custom_call.1} parent=0 // pred_fallthru
    _
  // Predicated region
  $region14: #{tpu_custom_call.1} parent=0 // pred_check
    _
  $region15: #{tpu_custom_call.1} parent=0 // pred_check_branch
    %42 = sbr.rel (0) target = $region17
  $region16: #{tpu_custom_call.1} parent=0 // pred_region
    _
  $region17: #{tpu_custom_call.1} parent=0 // pred_fallthru
    _

</llo_original>
